<compile_context>
chip_gen: v5e
topology: v5e:2x2
jax: 0.10.0
libtpu: 0.0.40
codegen_flags: <defaults>
</compile_context>

<pallas_src>
import functools

import jax
import jax.numpy as jnp
from jax.experimental import pallas as pl
from jax.experimental.pallas import tpu as pltpu

IEPS_LN_DEFAULT = 1e-6          # ieps_ln_default in the reference repo
ENABLE_LN_PARAMETERS = True     # elementwise_affine


def _round_up(n, m):
    return ((n + m - 1) // m) * m


def _pick_tile_s(S, max_tile):
    """Largest S-tile <= max_tile that divides S and keeps blocks (8,128)-legal."""
    if S <= max_tile:
        return S
    for t in range(max_tile, 0, -1):
        if S % t == 0 and t % 8 == 0:
            return t
    return S   # fall back to no S-tiling


def _vmem_limit_bytes(vmem_est):
    """Scoped-VMEM request clamped against the real per-TensorCore capacity."""
    try:
        cap = int(pltpu.get_tpu_info().vmem_capacity_bytes)
    except Exception:
        cap = 64 * 1024 * 1024          # v7x per-TC floor: safe on every generation
    want = max(32 * 1024 * 1024, 2 * int(vmem_est))
    return int(max(min(want, cap - 8 * 1024 * 1024), 16 * 1024 * 1024))


def _make_kernel(S, D, tile_s, kernel_size, eps, front):
    k = int(kernel_size)
    T = int(tile_s)
    f32 = jnp.float32

    def kernel(x_ref, w_ref, bias_ref, o_ref, p_ref):
        # grid = (batch, s_tile); p_ref caches the per-batch inclusive prefix
        # sum P with `front` zero rows in front (P[m<0]=0) and k clamped rows
        # behind (P[m>=S]=P[S-1]):  p_ref[front + m] = P[m].
        s = pl.program_id(1)

        # ---- once per batch element: inclusive prefix sum along S ----------
        @pl.when(s == 0)
        def _():
            P = x_ref[0].astype(f32)                             # (S, D)
            row = jax.lax.broadcasted_iota(jnp.int32, (S, D), 0)
            shift = 1
            while shift < S:                                     # Hillis-Steele scan,
                P = P + jnp.where(row >= shift,                  # roll on the XLU
                                  pltpu.roll(P, shift, axis=0), 0.0)
                shift *= 2
            p_ref[pl.ds(0, front), :] = jnp.zeros((front, D), f32)   # 8-aligned
            p_ref[pl.ds(front, S), :] = P                            # 8-aligned start
            if k > 0:
                p_ref[pl.ds(front + S, k), :] = jnp.broadcast_to(
                    P[S - 1:S, :], (k, D))

        # ---- per S-tile: streams from direct shifted cumsum loads ----------
        t0 = pl.multiple_of(s * T, T)
        base = front + t0
        x_t = x_ref[0, pl.ds(t0, T), :].astype(f32)              # (T, D)

        lbow = p_ref[pl.ds(base - 1, T), :] - p_ref[pl.ds(base - (k + 1), T), :]
        lctx = p_ref[pl.ds(base - k, T), :] - lbow
        rbow = p_ref[pl.ds(base + k, T), :] - p_ref[pl.ds(base, T), :]
        total = p_ref[pl.ds(front + S - 1, 1), :]                # (1, D) == P[S-1]
        rctx = (total - p_ref[pl.ds(base + 1, T), :]) - rbow

        # ---- LayerNorm over the (4, D) block per position (two-pass var) ---
        inv_n = 1.0 / (4.0 * D)
        mean = (lctx + lbow + rbow + rctx).sum(axis=-1, keepdims=True) * inv_n
        d0 = lctx - mean
        d1 = lbow - mean
        d2 = rbow - mean
        d3 = rctx - mean
        var = (d0 * d0 + d1 * d1 + d2 * d2 + d3 * d3).sum(
            axis=-1, keepdims=True) * inv_n
        inv_std = jax.lax.rsqrt(var + eps)

        # gamma/beta are folded into w_ref / bias_ref by the wrapper, so the
        # GroupLinear collapses to one lane-dense block-diagonal matmul.
        cat5 = jnp.concatenate(
            [d0 * inv_std, d1 * inv_std, d2 * inv_std, d3 * inv_std, x_t],
            axis=-1).astype(jnp.bfloat16)                        # (T, 5D)

        acc = jnp.dot(cat5, w_ref[...], preferred_element_type=f32)
        o_ref[0, :, :] = (acc + bias_ref[...]).astype(o_ref.dtype)   # one store

    return kernel


def dbow_input_forward(x, gamma, beta, w, *, kernel_size, eps=IEPS_LN_DEFAULT,
                       out_dtype=None, max_tile_s=None):
    """x: (B, S, D) -> (B, S, 5, D), matching DBOWInput.forward."""
    B, S, D = x.shape
    k = int(kernel_size)
    f32 = jnp.float32
    out_dtype = x.dtype if out_dtype is None else jnp.dtype(out_dtype)
    if max_tile_s is None:
        # Bigger tiles only pay once vreg pressure allows it: D >= 128 streams
        # are full-vreg; keep 256 for the lane-sparse module-native D = 32.
        max_tile_s = 512 if D >= 128 else 256
    T = _pick_tile_s(S, max_tile_s)
    n_tiles = S // T
    front = _round_up(k + 1, 8)      # 8-aligned zero pad -> unmasked P store

    # ---- one-time parameter folding (ideally hoisted out of the step fn) ---
    gamma = gamma.astype(f32)
    beta = beta.astype(f32)
    w = w.astype(f32)
    w_eff = jnp.concatenate([gamma[:, :, None] * w[:4], w[4:5]], axis=0)   # (5,D,D)
    bias = jnp.concatenate(
        [jnp.einsum('gd,gde->ge', beta, w[:4]).reshape(1, 4 * D),
         jnp.zeros((1, D), f32)], axis=-1)                                  # (1,5D)
    w_bd = jnp.zeros((5, D, 5, D), f32)
    for g in range(5):
        w_bd = w_bd.at[g, :, g, :].set(w_eff[g])
    w_bd = w_bd.reshape(5 * D, 5 * D).astype(jnp.bfloat16)   # block-diag, bf16 MXU

    kernel = _make_kernel(S, D, T, k, eps, front)

    in_bytes = jnp.dtype(x.dtype).itemsize
    out_bytes = jnp.dtype(out_dtype).itemsize
    vmem_est = (2 * S * D * in_bytes                  # x (double-buffered)
                + (front + S + k) * D * 4             # prefix-sum scratch
                + 2 * T * 5 * D * out_bytes           # out tile (double-buffered)
                + 2 * (5 * D) * (5 * D) * 2           # block-diag weight (bf16)
                + 2 * 5 * D * 4                       # folded bias
                + 16 * T * D * 4)                     # live temporaries
    vmem_limit = _vmem_limit_bytes(vmem_est)

    out = pl.pallas_call(
        kernel,
        out_shape=jax.ShapeDtypeStruct((B, S, 5 * D), out_dtype),
        grid_spec=pltpu.PrefetchScalarGridSpec(
            num_scalar_prefetch=0,
            grid=(B, n_tiles),
            in_specs=[
                pl.BlockSpec((1, S, D), lambda b, s: (b, 0, 0)),      # x, resident per b
                pl.BlockSpec((5 * D, 5 * D), lambda b, s: (0, 0)),    # block-diag W (bf16)
                pl.BlockSpec((1, 5 * D), lambda b, s: (0, 0)),        # folded bias
            ],
            out_specs=pl.BlockSpec((1, T, 5 * D), lambda b, s: (b, s, 0)),
            scratch_shapes=[pltpu.VMEM((front + S + k, D), jnp.float32)],
        ),
        compiler_params=pltpu.CompilerParams(
            dimension_semantics=("parallel", "arbitrary"),
            vmem_limit_bytes=vmem_limit,
        ),
    )(x, w_bd, bias)

    # Splitting only the minormost dim: free reshape, no HBM transpose pass.
    return out.reshape(B, S, 5, D)


def dbow_input_reference(x, gamma, beta, w, *, kernel_size, eps=IEPS_LN_DEFAULT):
    """Pure-JAX op-by-op transcription of the PyTorch forward (for checking)."""
    B, S, D = x.shape
    k = kernel_size
    pad = jnp.zeros((B, k, D), x.dtype)
    out = jnp.concatenate([pad, x, pad], axis=1)                  # (B, S+2k, D)
    csum = jnp.cumsum(out, axis=1)
    csum_ext = jnp.concatenate([jnp.zeros((B, 1, D), x.dtype), csum], axis=1)
    bow = csum_ext[:, k:, :] - csum_ext[:, :-k, :]                # AvgPool1d * k
    lbow, rbow = bow[:, :S, :], bow[:, k + 1:k + 1 + S, :]
    total = csum[:, -1:, :]
    rcum = total - csum[:, k + 1:k + 1 + S, :]
    lctx = csum[:, :S, :] - lbow
    rctx = rcum - rbow
    stacked = jnp.stack([lctx, lbow, rbow, rctx], axis=2)         # (B, S, 4, D)
    mean = stacked.mean(axis=(2, 3), keepdims=True)
    var = ((stacked - mean) ** 2).mean(axis=(2, 3), keepdims=True)
    normed = (stacked - mean) * jax.lax.rsqrt(var + eps) * gamma + beta
    cat5 = jnp.concatenate([normed, x[:, :, None, :]], axis=2)    # (B, S, 5, D)
    return jnp.einsum('bsgd,gde->bsge', cat5, w,
                      precision=jax.lax.Precision.HIGHEST)


if __name__ == "__main__":
    B, S, D = 2, 8, 32            # batch, seq, isize
    KSIZE = 3                     # kernel_size (= zpad)

    key = jax.random.PRNGKey(0)
    kx, kw, kg, kb = jax.random.split(key, 4)
    x = jax.random.normal(kx, (B, S, D), dtype=jnp.float32)

    # Deterministic synthetic parameters (shapes per the module's __init__):
    #   LayerNorm((4, isize)) -> gamma/beta of shape (4, D)
    #   GroupLinear(5*D, 5*D, 5, bias=False) -> per-group weight (5, D, D)
    gamma = 1.0 + 0.1 * jax.random.normal(kg, (4, D), dtype=jnp.float32)
    beta = 0.1 * jax.random.normal(kb, (4, D), dtype=jnp.float32)
    bound = (1.0 / D) ** 0.5
    w = jax.random.uniform(kw, (5, D, D), jnp.float32, -bound, bound)

    fwd = jax.jit(functools.partial(dbow_input_forward, kernel_size=KSIZE))
    y = jax.block_until_ready(fwd(x, gamma, beta, w))
    assert y.shape == (B, S, 5, D), y.shape

    y_ref = dbow_input_reference(x, gamma, beta, w, kernel_size=KSIZE)
    max_err = float(jnp.max(jnp.abs(y - y_ref)))
    # bf16 MXU operands in the kernel vs f32 HIGHEST reference -> looser tol.
    assert max_err < 3e-2, f"mismatch vs reference: max abs err {max_err}"

    print("KERNEL_OK")
</pallas_src>

<mosaic_0001>
module attributes {stable_mosaic.version = 11 : i64} {
  func.func @kernel(%arg0: i32, %arg1: i32, %arg2: memref<1x8x32xf32, #tpu.memory_space<vmem>>, %arg3: memref<160x160xbf16, #tpu.memory_space<vmem>>, %arg4: memref<1x160xf32, #tpu.memory_space<vmem>>, %arg5: memref<1x8x160xf32, #tpu.memory_space<vmem>>, %arg6: memref<19x32xf32, #tpu.memory_space<vmem>>) attributes {dimension_semantics = [#tpu.dimension_semantics<parallel>, #tpu.dimension_semantics<arbitrary>], iteration_bounds = array<i64: 2, 1>, scalar_prefetch = 0 : i64, scratch_operands = 1 : i64, tpu.core_type = #tpu.core_type<tc>, window_params = [{transform_indices = @transform_0, window_bounds = array<i64: 1, 8, 32>}, {pipeline_mode = #tpu.pipeline_mode<synchronous>, transform_indices = @transform_1, window_bounds = array<i64: 160, 160>}, {pipeline_mode = #tpu.pipeline_mode<synchronous>, transform_indices = @transform_2, window_bounds = array<i64: 1, 160>}, {transform_indices = @transform_3, window_bounds = array<i64: 1, 8, 160>}]} {
    %c0_i32 = arith.constant 0 : i32
    %0 = arith.cmpi eq, %arg1, %c0_i32 : i32
    %1 = arith.extui %0 : i1 to i32
    %c0_i32_0 = arith.constant 0 : i32
    %2 = arith.cmpi ne, %1, %c0_i32_0 : i32
    scf.if %2 {
      %c0_24 = arith.constant 0 : index
      %c0_25 = arith.constant 0 : index
      %c0_26 = arith.constant 0 : index
      %80 = vector.load %arg2[%c0_24, %c0_25, %c0_26] : memref<1x8x32xf32, #tpu.memory_space<vmem>>, vector<1x8x32xf32>
      %81 = vector.shape_cast %80 : vector<1x8x32xf32> to vector<8x32xf32>
      %82 = tpu.iota {dimensions = array<i32: 0>} : vector<8x32xi32>
      %c1_i32_27 = arith.constant 1 : i32
      %83 = vector.broadcast %c1_i32_27 : i32 to vector<8x32xi32>
      %84 = arith.cmpi sge, %82, %83 : vector<8x32xi32>
      %c1_i32_28 = arith.constant 1 : i32
      %85 = tpu.dynamic_rotate %81 by %c1_i32_28 dim 0 : vector<8x32xf32>, i32 -> vector<8x32xf32>
      %cst_29 = arith.constant 0.000000e+00 : f32
      %86 = vector.broadcast %cst_29 : f32 to vector<8x32xf32>
      %87 = arith.select %84, %85, %86 : vector<8x32xi1>, vector<8x32xf32>
      %88 = arith.addf %81, %87 : vector<8x32xf32>
      %c2_i32 = arith.constant 2 : i32
      %89 = vector.broadcast %c2_i32 : i32 to vector<8x32xi32>
      %90 = arith.cmpi sge, %82, %89 : vector<8x32xi32>
      %c2_i32_30 = arith.constant 2 : i32
      %91 = tpu.dynamic_rotate %88 by %c2_i32_30 dim 0 : vector<8x32xf32>, i32 -> vector<8x32xf32>
      %cst_31 = arith.constant 0.000000e+00 : f32
      %92 = vector.broadcast %cst_31 : f32 to vector<8x32xf32>
      %93 = arith.select %90, %91, %92 : vector<8x32xi1>, vector<8x32xf32>
      %94 = arith.addf %88, %93 : vector<8x32xf32>
      %c4_i32_32 = arith.constant 4 : i32
      %95 = vector.broadcast %c4_i32_32 : i32 to vector<8x32xi32>
      %96 = arith.cmpi sge, %82, %95 : vector<8x32xi32>
      %c4_i32_33 = arith.constant 4 : i32
      %97 = tpu.dynamic_rotate %94 by %c4_i32_33 dim 0 : vector<8x32xf32>, i32 -> vector<8x32xf32>
      %cst_34 = arith.constant 0.000000e+00 : f32
      %98 = vector.broadcast %cst_34 : f32 to vector<8x32xf32>
      %99 = arith.select %96, %97, %98 : vector<8x32xi1>, vector<8x32xf32>
      %100 = arith.addf %94, %99 : vector<8x32xf32>
      %cst_35 = arith.constant 0.000000e+00 : f32
      %101 = vector.broadcast %cst_35 : f32 to vector<8x32xf32>
      %c0_36 = arith.constant 0 : index
      %c0_37 = arith.constant 0 : index
      %102 = vector.load %arg6[%c0_36, %c0_37] : memref<19x32xf32, #tpu.memory_space<vmem>>, vector<8x32xf32>
      tpu.vector_store %arg6[%c0_36, %c0_37], %101 {strides = array<i32>} : memref<19x32xf32, #tpu.memory_space<vmem>>, vector<8x32xf32>,
      %c8 = arith.constant 8 : index
      %c0_38 = arith.constant 0 : index
      %103 = vector.load %arg6[%c8, %c0_38] : memref<19x32xf32, #tpu.memory_space<vmem>>, vector<8x32xf32>
      tpu.vector_store %arg6[%c8, %c0_38], %100 {strides = array<i32>} : memref<19x32xf32, #tpu.memory_space<vmem>>, vector<8x32xf32>,
      %104 = vector.extract_strided_slice %100 {offsets = [7, 0], sizes = [1, 32], strides = [1, 1]} : vector<8x32xf32> to vector<1x32xf32>
      %105 = vector.shape_cast %104 : vector<1x32xf32> to vector<1x32xf32>
      %106 = vector.broadcast %105 : vector<1x32xf32> to vector<3x32xf32>
      %c16 = arith.constant 16 : index
      %c0_39 = arith.constant 0 : index
      %107 = vector.load %arg6[%c16, %c0_39] : memref<19x32xf32, #tpu.memory_space<vmem>>, vector<3x32xf32>
      tpu.vector_store %arg6[%c16, %c0_39], %106 {strides = array<i32>} : memref<19x32xf32, #tpu.memory_space<vmem>>, vector<3x32xf32>,
    } else {
    }
    %c8_i32 = arith.constant 8 : i32
    %3 = arith.muli %arg1, %c8_i32 : i32
    %4 = tpu.assume_multiple %3, 8 : i32
    %c8_i32_1 = arith.constant 8 : i32
    %5 = arith.addi %c8_i32_1, %4 : i32
    %c0 = arith.constant 0 : index
    %6 = arith.index_cast %4 : i32 to index
    %c0_2 = arith.constant 0 : index
    %7 = vector.load %arg2[%c0, %6, %c0_2] : memref<1x8x32xf32, #tpu.memory_space<vmem>>, vector<1x8x32xf32>
    %8 = vector.shape_cast %7 : vector<1x8x32xf32> to vector<8x32xf32>
    %c1_i32 = arith.constant 1 : i32
    %9 = arith.subi %5, %c1_i32 : i32
    %10 = arith.index_cast %9 : i32 to index
    %c0_3 = arith.constant 0 : index
    %11 = vector.load %arg6[%10, %c0_3] : memref<19x32xf32, #tpu.memory_space<vmem>>, vector<8x32xf32>
    %c4_i32 = arith.constant 4 : i32
    %12 = arith.subi %5, %c4_i32 : i32
    %13 = arith.index_cast %12 : i32 to index
    %c0_4 = arith.constant 0 : index
    %14 = vector.load %arg6[%13, %c0_4] : memref<19x32xf32, #tpu.memory_space<vmem>>, vector<8x32xf32>
    %15 = arith.subf %11, %14 : vector<8x32xf32>
    %c3_i32 = arith.constant 3 : i32
    %16 = arith.subi %5, %c3_i32 : i32
    %17 = arith.index_cast %16 : i32 to index
    %c0_5 = arith.constant 0 : index
    %18 = vector.load %arg6[%17, %c0_5] : memref<19x32xf32, #tpu.memory_space<vmem>>, vector<8x32xf32>
    %19 = arith.subf %18, %15 : vector<8x32xf32>
    %c3_i32_6 = arith.constant 3 : i32
    %20 = arith.addi %5, %c3_i32_6 : i32
    %21 = arith.index_cast %20 : i32 to index
    %c0_7 = arith.constant 0 : index
    %22 = vector.load %arg6[%21, %c0_7] : memref<19x32xf32, #tpu.memory_space<vmem>>, vector<8x32xf32>
    %23 = arith.index_cast %5 : i32 to index
    %c0_8 = arith.constant 0 : index
    %24 = vector.load %arg6[%23, %c0_8] : memref<19x32xf32, #tpu.memory_space<vmem>>, vector<8x32xf32>
    %25 = arith.subf %22, %24 : vector<8x32xf32>
    %c15 = arith.constant 15 : index
    %c0_9 = arith.constant 0 : index
    %26 = vector.load %arg6[%c15, %c0_9] : memref<19x32xf32, #tpu.memory_space<vmem>>, vector<1x32xf32>
    %c1_i32_10 = arith.constant 1 : i32
    %27 = arith.addi %5, %c1_i32_10 : i32
    %28 = arith.index_cast %27 : i32 to index
    %c0_11 = arith.constant 0 : index
    %29 = vector.load %arg6[%28, %c0_11] : memref<19x32xf32, #tpu.memory_space<vmem>>, vector<8x32xf32>
    %30 = vector.broadcast %26 : vector<1x32xf32> to vector<8x32xf32>
    %31 = arith.subf %30, %29 : vector<8x32xf32>
    %32 = arith.subf %31, %25 : vector<8x32xf32>
    %33 = arith.addf %19, %15 : vector<8x32xf32>
    %34 = arith.addf %33, %25 : vector<8x32xf32>
    %35 = arith.addf %34, %32 : vector<8x32xf32>
    %cst = arith.constant dense<0.000000e+00> : vector<8xf32>
    %36 = vector.multi_reduction <add>, %35, %cst [1] : vector<8x32xf32> to vector<8xf32>
    %37 = vector.shape_cast %36 : vector<8xf32> to vector<8x1xf32>
    %cst_12 = arith.constant 7.812500e-03 : f32
    %38 = vector.broadcast %cst_12 : f32 to vector<8x1xf32>
    %39 = arith.mulf %37, %38 : vector<8x1xf32>
    %40 = vector.broadcast %39 : vector<8x1xf32> to vector<8x32xf32>
    %41 = arith.subf %19, %40 : vector<8x32xf32>
    %42 = vector.broadcast %39 : vector<8x1xf32> to vector<8x32xf32>
    %43 = arith.subf %15, %42 : vector<8x32xf32>
    %44 = vector.broadcast %39 : vector<8x1xf32> to vector<8x32xf32>
    %45 = arith.subf %25, %44 : vector<8x32xf32>
    %46 = vector.broadcast %39 : vector<8x1xf32> to vector<8x32xf32>
    %47 = arith.subf %32, %46 : vector<8x32xf32>
    %48 = arith.mulf %41, %41 : vector<8x32xf32>
    %49 = arith.mulf %43, %43 : vector<8x32xf32>
    %50 = arith.addf %48, %49 : vector<8x32xf32>
    %51 = arith.mulf %45, %45 : vector<8x32xf32>
    %52 = arith.addf %50, %51 : vector<8x32xf32>
    %53 = arith.mulf %47, %47 : vector<8x32xf32>
    %54 = arith.addf %52, %53 : vector<8x32xf32>
    %cst_13 = arith.constant dense<0.000000e+00> : vector<8xf32>
    %55 = vector.multi_reduction <add>, %54, %cst_13 [1] : vector<8x32xf32> to vector<8xf32>
    %56 = vector.shape_cast %55 : vector<8xf32> to vector<8x1xf32>
    %cst_14 = arith.constant 7.812500e-03 : f32
    %57 = vector.broadcast %cst_14 : f32 to vector<8x1xf32>
    %58 = arith.mulf %56, %57 : vector<8x1xf32>
    %cst_15 = arith.constant 9.99999997E-7 : f32
    %59 = vector.broadcast %cst_15 : f32 to vector<8x1xf32>
    %60 = arith.addf %58, %59 : vector<8x1xf32>
    %61 = math.rsqrt %60 : vector<8x1xf32>
    %62 = vector.broadcast %61 : vector<8x1xf32> to vector<8x32xf32>
    %63 = arith.mulf %41, %62 : vector<8x32xf32>
    %64 = vector.broadcast %61 : vector<8x1xf32> to vector<8x32xf32>
    %65 = arith.mulf %43, %64 : vector<8x32xf32>
    %66 = vector.broadcast %61 : vector<8x1xf32> to vector<8x32xf32>
    %67 = arith.mulf %45, %66 : vector<8x32xf32>
    %68 = vector.broadcast %61 : vector<8x1xf32> to vector<8x32xf32>
    %69 = arith.mulf %47, %68 : vector<8x32xf32>
    %70 = tpu.concatenate %63, %65, %67, %69, %8 in 1 : vector<8x32xf32>, vector<8x32xf32>, vector<8x32xf32>, vector<8x32xf32>, vector<8x32xf32> -> vector<8x160xf32>
    %71 = arith.truncf %70 : vector<8x160xf32> to vector<8x160xbf16>
    %c0_16 = arith.constant 0 : index
    %c0_17 = arith.constant 0 : index
    %72 = vector.load %arg3[%c0_16, %c0_17] : memref<160x160xbf16, #tpu.memory_space<vmem>>, vector<160x160xbf16>
    %cst_18 = arith.constant dense<0.000000e+00> : vector<8x160xf32>
    %73 = tpu.matmul %71, %72, %cst_18 {dimension_numbers = #tpu.dot_dimension_numbers<[1], [0], [0], [1], [0, 0, 1, 1], [], []>} : vector<8x160xbf16>, vector<160x160xbf16>, vector<8x160xf32> -> vector<8x160xf32>
    %c0_19 = arith.constant 0 : index
    %c0_20 = arith.constant 0 : index
    %74 = vector.load %arg4[%c0_19, %c0_20] : memref<1x160xf32, #tpu.memory_space<vmem>>, vector<1x160xf32>
    %75 = vector.broadcast %74 : vector<1x160xf32> to vector<8x160xf32>
    %76 = arith.addf %73, %75 : vector<8x160xf32>
    %c0_21 = arith.constant 0 : index
    %c0_22 = arith.constant 0 : index
    %c0_23 = arith.constant 0 : index
    %77 = vector.load %arg5[%c0_21, %c0_22, %c0_23] : memref<1x8x160xf32, #tpu.memory_space<vmem>>, vector<1x8x160xf32>
    %78 = vector.shape_cast %77 : vector<1x8x160xf32> to vector<8x160xf32>
    %79 = vector.shape_cast %76 : vector<8x160xf32> to vector<1x8x160xf32>
    tpu.vector_store %arg5[%c0_21, %c0_22, %c0_23], %79 {strides = array<i32>} : memref<1x8x160xf32, #tpu.memory_space<vmem>>, vector<1x8x160xf32>,
    return
  }
  func.func @transform_0(%arg0: i32, %arg1: i32) -> (i32, i32, i32) {
    %c0_i32 = arith.constant 0 : i32
    %c0_i32_0 = arith.constant 0 : i32
    %c0_i32_1 = arith.constant 0 : i32
    return %arg0, %c0_i32, %c0_i32_0 : i32, i32, i32
  }
  func.func @transform_1(%arg0: i32, %arg1: i32) -> (i32, i32) {
    %c0_i32 = arith.constant 0 : i32
    %c0_i32_0 = arith.constant 0 : i32
    %c0_i32_1 = arith.constant 0 : i32
    return %c0_i32, %c0_i32_0 : i32, i32
  }
  func.func @transform_2(%arg0: i32, %arg1: i32) -> (i32, i32) {
    %c0_i32 = arith.constant 0 : i32
    %c0_i32_0 = arith.constant 0 : i32
    %c0_i32_1 = arith.constant 0 : i32
    return %c0_i32, %c0_i32_0 : i32, i32
  }
  func.func @transform_3(%arg0: i32, %arg1: i32) -> (i32, i32, i32) {
    %c0_i32 = arith.constant 0 : i32
    %c0_i32_0 = arith.constant 0 : i32
    return %arg0, %arg1, %c0_i32 : i32, i32, i32
  }
}

</mosaic_0001>

<llo_original>
// kernel: dbow_input_forward.1
$region0: #{dbow_input_forward.1}
  #allocation0 [shape = 'u32[]', space=smem, size = 0x4, offset = 0x4, fixed_abs, tag = 'smem constant byte address 0x4 - core index']
  #allocation1 [shape = 'u32[72,128]{1,0:T(1,128)}', space=vmem, size = 0x9000, scoped, tag = 'internal scratch']
  #allocation2 [shape = 'f32[19,32]{1,0:T(8,128)}', space=vmem, size = 0x3000, scoped, tag = 'scratch operand']
  %s0 = inlined_call_operand.vmem [shape: f32[2,8,32], index: 0, kind: input, shape index: {}]
  %s1 = inlined_call_operand.vmem [shape: bf16[160,160], index: 1, kind: input, shape index: {}]
  %s2 = inlined_call_operand.vmem [shape: f32[1,160], index: 2, kind: input, shape index: {}]
  %s3 = inlined_call_operand.vmem [shape: f32[2,8,160], index: 3, kind: output, shape index: {}]
  %s4 = sld [smem:[#allocation0]]
  $region49: #{dbow_input_forward.1} parent=0
    _
  %s6 = ssub.s32 1, %s4
  %s7 = scalar_select 0, %s6, %s4
  loop: start=0, step=1, limit=4
  $region2: #{dbow_input_forward.1} parent=0 // loop_pre_header
    _
  $region3: #{dbow_input_forward.1} parent=0 // loop_header
    %s9 = sphi 0, %s13
    %p10 = scmp.ge.s32.totalorder %s9, 4
    %s16 = sphi 0, %s28
    %s17 = sphi 0, %s24
    %s18 = sphi 0, %s16
    %s19 = sphi 0, %s17
    %s20 = sphi 0, %s18
    %s21 = sphi 0, %s19
    %s31 = sphi 0, %s33
    %s34 = sphi 0, %s31
    %s35 = sphi 0, %s34
    %s51 = sphi 0, %s35
    %s55 = sphi 0, %s55
    %s57 = sphi 0, %s55
    %s58 = sphi 0, %s57
    %s72 = sphi 0, %s58
    %s76 = sphi 0, %s76
    %s78 = sphi 0, %s76
    %s79 = sphi 0, %s78
    %s93 = sphi 0, %s79
    %s101 = sphi 0, %s103
    %s104 = sphi 0, %s101
    %s105 = sphi 0, %s104
    %s121 = sphi 0, %s105
  $region4: #{dbow_input_forward.1} parent=0 // loop_header_branch
    %12 = sbr.rel (%p10) target = $region8
  $region5: #{dbow_input_forward.1} parent=0 // loop_body
    %s14 = ssub.s32 %s9, 1
    %s15 = ssub.s32 %s9, 2
    %s22 = sadd.s32 1, %s17
    %p23 = scmp.ge.s32.totalorder %s22, 1
    %s24 = scalar_select %p23, 0, %s22
    %s25 = sadd.s32 1, %s16
    %s26 = scalar_select %p23, %s25, %s16
    %p27 = scmp.ge.s32.totalorder %s26, 2
    %s28 = scalar_select %p27, 0, %s26
    %s29 = ssub.s32 %s16, %s28
    %p30 = scmp.eq.s32.totalorder %s29, 0
    %s32 = sadd.s32 %s31, 1
    %s33 = scalar_select %p30, %s31, %s32
    %p36 = pneg %p30
    %p37 = scmp.eq.s32.totalorder %s9, 1
    %p38 = por %p36, %p37
    %p39 = scmp.ne.s32.totalorder %s31, %s34
    %p40 = scmp.eq.s32.totalorder %s9, 0
    %p41 = por %p39, %p40
    %p42 = scmp.ne.s32.totalorder %s31, %s34
    %p43 = scmp.eq.s32.totalorder %s14, 1
    %p44 = por %p42, %p43
    %p45 = scmp.ne.s32.totalorder %s34, %s35
    %p46 = scmp.eq.s32.totalorder %s14, 0
    %p47 = por %p45, %p46
    %p48 = scmp.ne.s32.totalorder %s34, %s35
    %p49 = scmp.eq.s32.totalorder %s15, 1
    %p50 = por %p48, %p49
    %p52 = scmp.ne.s32.totalorder %s35, %s51
    %p53 = scmp.eq.s32.totalorder %s15, 0
    %p54 = por %p52, %p53
    %s56 = sadd.s32 %s55, 1
    %p59 = scmp.eq.s32.totalorder %s9, 1
    %p60 = scmp.ne.s32.totalorder %s55, %s57
    %p61 = scmp.eq.s32.totalorder %s9, 0
    %p62 = por %p60, %p61
    %p63 = scmp.ne.s32.totalorder %s55, %s57
    %p64 = scmp.eq.s32.totalorder %s14, 1
    %p65 = por %p63, %p64
    %p66 = scmp.ne.s32.totalorder %s57, %s58
    %p67 = scmp.eq.s32.totalorder %s14, 0
    %p68 = por %p66, %p67
    %p69 = scmp.ne.s32.totalorder %s57, %s58
    %p70 = scmp.eq.s32.totalorder %s15, 1
    %p71 = por %p69, %p70
    %p73 = scmp.ne.s32.totalorder %s58, %s72
    %p74 = scmp.eq.s32.totalorder %s15, 0
    %p75 = por %p73, %p74
    %s77 = sadd.s32 %s76, 1
    %p80 = scmp.eq.s32.totalorder %s9, 1
    %p81 = scmp.ne.s32.totalorder %s76, %s78
    %p82 = scmp.eq.s32.totalorder %s9, 0
    %p83 = por %p81, %p82
    %p84 = scmp.ne.s32.totalorder %s76, %s78
    %p85 = scmp.eq.s32.totalorder %s14, 1
    %p86 = por %p84, %p85
    %p87 = scmp.ne.s32.totalorder %s78, %s79
    %p88 = scmp.eq.s32.totalorder %s14, 0
    %p89 = por %p87, %p88
    %p90 = scmp.ne.s32.totalorder %s78, %s79
    %p91 = scmp.eq.s32.totalorder %s15, 1
    %p92 = por %p90, %p91
    %p94 = scmp.ne.s32.totalorder %s79, %s93
    %p95 = scmp.eq.s32.totalorder %s15, 0
    %p96 = por %p94, %p95
    %s97 = ssub.s32 %s16, %s28
    %s98 = ssub.s32 %s17, %s24
    %s99 = sor.u32 %s97, %s98
    %p100 = scmp.eq.s32.totalorder %s99, 0
    %s102 = sadd.s32 %s101, 1
    %s103 = scalar_select %p100, %s101, %s102
    %p106 = pneg %p100
    %p107 = scmp.eq.s32.totalorder %s9, 1
    %p108 = por %p106, %p107
    %p109 = scmp.ne.s32.totalorder %s101, %s104
    %p110 = scmp.eq.s32.totalorder %s9, 0
    %p111 = por %p109, %p110
    %p112 = scmp.ne.s32.totalorder %s101, %s104
    %p113 = scmp.eq.s32.totalorder %s14, 1
    %p114 = por %p112, %p113
    %p115 = scmp.ne.s32.totalorder %s104, %s105
    %p116 = scmp.eq.s32.totalorder %s14, 0
    %p117 = por %p115, %p116
    %p118 = scmp.ne.s32.totalorder %s104, %s105
    %p119 = scmp.eq.s32.totalorder %s15, 1
    %p120 = por %p118, %p119
    %p122 = scmp.ne.s32.totalorder %s105, %s121
    %p123 = scmp.eq.s32.totalorder %s15, 0
    %p124 = por %p122, %p123
    %p125 = scmp.le.s32.totalorder 1, %s9
    %p126 = scmp.lt.s32.totalorder %s9, 3
    %p127 = pnand %p125, %p126
    %p128 = pneg %p127
    // Predicated region
    $region9: #{dbow_input_forward.1} parent=5 // pred_check
      _
    $region10: #{dbow_input_forward.1} parent=5 // pred_check_branch
      %130 = sbr.rel (%p127) target = $region12
    $region11: #{dbow_input_forward.1} parent=5 // pred_region
      %s131 = ssub.s32 %s9, 1
      // Predicated region
      $region13: #{dbow_input_forward.1} parent=11 // pred_check
        %p132 = pneg %p68
      $region14: #{dbow_input_forward.1} parent=11 // pred_check_branch
        %134 = sbr.rel (%p132) target = $region16
      $region15: #{dbow_input_forward.1} parent=11 // pred_region
        _
      $region16: #{dbow_input_forward.1} parent=11 // pred_fallthru
        _
      // Predicated region
      $region17: #{dbow_input_forward.1} parent=11 // pred_check
        %p135 = pneg %p89
      $region18: #{dbow_input_forward.1} parent=11 // pred_check_branch
        %137 = sbr.rel (%p135) target = $region20
      $region19: #{dbow_input_forward.1} parent=11 // pred_region
        _
      $region20: #{dbow_input_forward.1} parent=11 // pred_fallthru
        _
    $region12: #{dbow_input_forward.1} parent=5 // pred_fallthru
      _
    %p138 = scmp.lt.s32.totalorder %s9, 2
    // Predicated region
    $region21: #{dbow_input_forward.1} parent=5 // pred_check
      %p139 = pneg %p138
    $region22: #{dbow_input_forward.1} parent=5 // pred_check_branch
      %141 = sbr.rel (%p139) target = $region24
    $region23: #{dbow_input_forward.1} parent=5 // pred_region
      // Predicated region
      $region25: #{dbow_input_forward.1} parent=23 // pred_check
        %p142 = pneg %p41
      $region26: #{dbow_input_forward.1} parent=23 // pred_check_branch
        %144 = sbr.rel (%p142) target = $region28
      $region27: #{dbow_input_forward.1} parent=23 // pred_region
        %p145 = scmp.lt.s32.totalorder %s16, 1
        %s146 = scalar_select %p145, %s16, 1
        %s147 = smul.addr %s146, 8
        %s148 = scalar_lea.vmem %s0, %s147
      $region28: #{dbow_input_forward.1} parent=23 // pred_fallthru
        _
    $region24: #{dbow_input_forward.1} parent=5 // pred_fallthru
      _
    %p149 = scmp.le.s32.totalorder 1, %s9
    %p150 = scmp.lt.s32.totalorder %s9, 3
    %p151 = pnand %p149, %p150
    %p152 = pneg %p151
    // Predicated region
    $region29: #{dbow_input_forward.1} parent=5 // pred_check
      _
    $region30: #{dbow_input_forward.1} parent=5 // pred_check_branch
      %154 = sbr.rel (%p151) target = $region32
    $region31: #{dbow_input_forward.1} parent=5 // pred_region
      %s155 = ssub.s32 %s9, 1
      %p156 = scmp.lt.s32.totalorder %s18, 1
      %s157 = scalar_select %p156, %s18, 1
      %s158 = smul.addr %s157, 8
      %s159 = scalar_lea.vmem %s0, %s158
      %p160 = pneg %p47
      %p161 = pneg %p44
      %p162 = pneg %p68
      %p163 = pneg %p65
      %p164 = pneg %p89
      %p165 = pneg %p86
      %p166 = pneg %p117
      %p167 = pneg %p114
      %p168 = scmp.lt.s32.totalorder %s18, 1
      %s169 = scalar_select %p168, %s18, 1
      %p170 = scmp.lt.s32.totalorder %s19, 0
      %s171 = scalar_select %p170, %s19, 0
      %s172 = smul.addr %s171, 2
      %s173 = smul.addr %s169, 2
      %s174 = sadd.s32 %s172, %s173
      %s175 = smul.addr %s174, 8
      %s176 = scalar_lea.vmem %s3, %s175
      %p177 = scmp.lt.s32.totalorder %s18, 1
      %s178 = scalar_select %p177, %s18, 1
      %s179 = smul.addr %s178, 8
      %s180 = scalar_lea.vmem %s0, %s179
      %p181 = scmp.lt.s32.totalorder %s18, 1
      %s182 = scalar_select %p181, %s18, 1
      %p183 = scmp.lt.s32.totalorder %s19, 0
      %s184 = scalar_select %p183, %s19, 0
      %s185 = smul.addr %s184, 2
      %s186 = smul.addr %s182, 2
      %s187 = sadd.s32 %s185, %s186
      %s188 = smul.addr %s187, 8
      %s189 = scalar_lea.vmem %s3, %s188
      %p191 = scmp.eq.s32.totalorder %s19, 0
      // Predicated region
      $region33: #{dbow_input_forward.1} parent=31 // pred_check
        %p192 = pneg %p191
      $region34: #{dbow_input_forward.1} parent=31 // pred_check_branch
        %194 = sbr.rel (%p192) target = $region36
      $region35: #{dbow_input_forward.1} parent=31 // pred_region
        %v195 = vld [vmem:[%s180] sm:$0xff]
        %v196 = vlaneseq
        %v197 = vshrl.u32 %v196, 7
        %vm198 = vcmp.ge.s32.totalorder %v197, 1
        %v199 = vrot.slane %v195, 7
        %v200 = vsel %vm198, %v199, 0.0
        %v201 = vadd.f32 %v195, %v200
        %vm202 = vcmp.ge.s32.totalorder %v197, 2
        %v203 = vrot.slane %v201, 6
        %v204 = vsel %vm202, %v203, 0.0
        %v205 = vadd.f32 %v201, %v204
        %vm206 = vcmp.ge.s32.totalorder %v197, 4
        %v207 = vrot.slane %v205, 4
        %v208 = vsel %vm206, %v207, 0.0
        %v209 = vadd.f32 %v205, %v208
        %vm210 = vcmask 261120
        %211 = vst.msk [vmem:[#allocation2] sm:$0xff] %vm210, 0.0
        %212 = vst.msk [vmem:[#allocation2 + $0x8] sm:$0xff] %vm210, %v209
        %v213 = vperm.slane %v209, 7
        %vm214 = vcmask 256000
        %215 = vst.msk [vmem:[#allocation2 + $0x10] sm:$0x7] %vm214, %v213
      $region36: #{dbow_input_forward.1} parent=31 // pred_fallthru
        _
      %s216 = smul.u32 %s19, 8
      %s217 = sadd.s32 %s216, 8
      %s218 = scalar_lea.vmem %s180, %s216
      %v219 = vld [vmem:[%s218] sm:$0xff]
      %s220 = sadd.s32 %s216, 7
      %s221 = scalar_lea.vmem [#allocation2], %s220
      %v222 = vld [vmem:[%s221] sm:$0xff]
      %s223 = sadd.s32 %s216, 4
      %s224 = scalar_lea.vmem [#allocation2], %s223
      %v225 = vld [vmem:[%s224] sm:$0xff]
      %v226 = vsub.f32 %v222, %v225
      %s227 = sadd.s32 %s216, 5
      %s228 = scalar_lea.vmem [#allocation2], %s227
      %v229 = vld [vmem:[%s228] sm:$0xff]
      %v230 = vsub.f32 %v229, %v226
      %s231 = sadd.s32 %s216, 11
      %s232 = scalar_lea.vmem [#allocation2], %s231
      %v233 = vld [vmem:[%s232] sm:$0xff]
      %s234 = scalar_lea.vmem [#allocation2], %s217
      %v235 = vld [vmem:[%s234] sm:$0xff]
      %v236 = vsub.f32 %v233, %v235
      %v237 = vld [vmem:[#allocation2 + $0xf] sm:$0x1]
      %s238 = sadd.s32 %s216, 9
      %s239 = scalar_lea.vmem [#allocation2], %s238
      %v240 = vld [vmem:[%s239] sm:$0xff]
      %v241 = vperm.slane %v237, 0
      %v242 = vsub.f32 %v241, %v240
      %v243 = vsub.f32 %v242, %v236
      %v244 = vadd.f32 %v230, %v226
      %v245 = vadd.f32 %v244, %v236
      %v246 = vadd.f32 %v245, %v243
      %vm247 = vcmask 261120
      %v248 = vsel %vm247, %v246, 0.0
      %249 = vadd.xlane.f32.xlu0 %v248
      %v250 = vpop.xlane.xlu0 %249
      %v251 = vmul.f32 %v250, 0.0078125
      %v252 = vsub.f32 %v230, %v251
      %v253 = vsub.f32 %v226, %v251
      %v254 = vsub.f32 %v236, %v251
      %v255 = vsub.f32 %v243, %v251
      %v256 = vmul.f32 %v252, %v252
      %v257 = vmul.f32 %v253, %v253
      %v258 = vadd.f32 %v256, %v257
      %v259 = vmul.f32 %v254, %v254
      %v260 = vadd.f32 %v258, %v259
      %v261 = vmul.f32 %v255, %v255
      %v262 = vadd.f32 %v260, %v261
      %v263 = vsel %vm247, %v262, 0.0
      %264 = vadd.xlane.f32.xlu0 %v263
      %v265 = vpop.xlane.xlu0 %264
      %v266 = vmul.f32 %v265, 0.0078125
      %v267 = vadd.f32 %v266, 1e-06
      %v268 = vrsqrt.pop %v267
      %v269 = vmul.f32 %v268, %v267
      %v270 = vmul.f32 %v269, %v268
      %v271 = vmul.f32 0.5, %v270
      %v272 = vsub.f32 1.5, %v271
      %v273 = vmul.f32 %v268, %v272
      %vm274 = vweird.f32 %v267
      %vm275 = vweird.f32 %v268
      %vm276 = vmor %vm274, %vm275
      %v277 = vsel %vm276, %v268, %v273
      %v278 = vmul.f32 %v252, %v277
      %v279 = vmul.f32 %v253, %v277
      %v280 = vmul.f32 %v254, %v277
      %v281 = vmul.f32 %v255, %v277
      %283 = vrot.lane.b32.xlu0 %v279, 32
      %v284 = vpop.permute.xlu0 %283
      %287 = vrot.lane.b32.xlu0 %v280, 64
      %v288 = vpop.permute.xlu0 %287
      %291 = vrot.lane.b32.xlu0 %v281, 96
      %v292 = vpop.permute.xlu0 %291
      %v294 = vsel %vm247, %v278, %v284
      %vm295 = vcmask 523264
      %v296 = vsel %vm295, %v294, %v288
      %vm297 = vcmask 785408
      %v298 = vsel %vm297, %v296, %v292
      %v299 = vpack.c.bf16 %v298, %v298
      %v300 = vpack.c.bf16 %v219, %v219
      %v301 = vld [vmem:[%s1] sm:$0xff]
      %v302 = vld [vmem:[%s1 + $0x8] sm:$0xff]
      %v303 = vld [vmem:[%s1 + $0x10] sm:$0xff]
      %v304 = vld [vmem:[%s1 + $0x18] sm:$0xff]
      %v305 = vld [vmem:[%s1 + $0x20] sm:$0xff]
      %v306 = vld [vmem:[%s1 + $0x28] sm:$0xff]
      %v307 = vld [vmem:[%s1 + $0x30] sm:$0xff]
      %v308 = vld [vmem:[%s1 + $0x38] sm:$0xff]
      %v309 = vld [vmem:[%s1 + $0x40] sm:$0xff]
      %v310 = vld [vmem:[%s1 + $0x48] sm:$0xff]
      %v311 = vld [vmem:[%s1 + $0x50] sm:$0xff]
      %v312 = vld [vmem:[%s1 + $0x58] sm:$0xff]
      %v313 = vld [vmem:[%s1 + $0x60] sm:$0xff]
      %v314 = vld [vmem:[%s1 + $0x68] sm:$0xff]
      %v315 = vld [vmem:[%s1 + $0x70] sm:$0xff]
      %v316 = vld [vmem:[%s1 + $0x78] sm:$0xff]
      %v317 = vld [vmem:[%s1 + $0x80] sm:$0xff]
      %v318 = vld [vmem:[%s1 + $0x88] sm:$0xff]
      %v319 = vld [vmem:[%s1 + $0x90] sm:$0xff]
      %v320 = vld [vmem:[%s1 + $0x98] sm:$0xff]
      %v321 = vld [vmem:[%s2] sm:$0x3]
      %v323 = vperm.slane %v321, 0
      %v324 = vperm.slane %v321, 1
      %v347 = vunpack.c.l.b16 %v301
      %v348 = vunpack.c.h.b16 %v301
      %v349 = vunpack.c.l.b16 %v302
      %v350 = vunpack.c.h.b16 %v302
      %v351 = vunpack.c.l.b16 %v303
      %v352 = vunpack.c.h.b16 %v303
      %v353 = vunpack.c.l.b16 %v304
      %v354 = vunpack.c.h.b16 %v304
      %v355 = vunpack.c.l.b16 %v305
      %v356 = vunpack.c.h.b16 %v305
      %v357 = vunpack.c.l.b16 %v306
      %v358 = vunpack.c.h.b16 %v306
      %v359 = vunpack.c.l.b16 %v307
      %v360 = vunpack.c.h.b16 %v307
      %v361 = vunpack.c.l.b16 %v308
      %v362 = vunpack.c.h.b16 %v308
      %v363 = vunpack.c.l.b16 %v309
      %v364 = vunpack.c.h.b16 %v309
      %v365 = vunpack.c.l.b16 %v310
      %v366 = vunpack.c.h.b16 %v310
      %v367 = vunpack.c.l.b16 %v311
      %v368 = vunpack.c.h.b16 %v311
      %v369 = vunpack.c.l.b16 %v312
      %v370 = vunpack.c.h.b16 %v312
      %v371 = vunpack.c.l.b16 %v313
      %v372 = vunpack.c.h.b16 %v313
      %v373 = vunpack.c.l.b16 %v314
      %v374 = vunpack.c.h.b16 %v314
      %v375 = vunpack.c.l.b16 %v315
      %v376 = vunpack.c.h.b16 %v315
      %v377 = vunpack.c.l.b16 %v316
      %v378 = vunpack.c.h.b16 %v316
      %v379 = vunpack.c.l.b16 %v317
      %v380 = vunpack.c.h.b16 %v317
      %v381 = vunpack.c.l.b16 %v318
      %v382 = vunpack.c.h.b16 %v318
      %v383 = vunpack.c.l.b16 %v319
      %v384 = vunpack.c.h.b16 %v319
      %v385 = vunpack.c.l.b16 %v320
      %v386 = vunpack.c.h.b16 %v320
      %v387 = vpack.c.b16 %v349, %v347
      %v388 = vpack.c.b16 %v350, %v348
      %v389 = vpack.c.b16 %v353, %v351
      %v390 = vpack.c.b16 %v354, %v352
      %v391 = vpack.c.b16 %v357, %v355
      %v392 = vpack.c.b16 %v358, %v356
      %v393 = vpack.c.b16 %v361, %v359
      %v394 = vpack.c.b16 %v362, %v360
      %v395 = vpack.c.b16 %v365, %v363
      %v396 = vpack.c.b16 %v366, %v364
      %v397 = vpack.c.b16 %v369, %v367
      %v398 = vpack.c.b16 %v370, %v368
      %v399 = vpack.c.b16 %v373, %v371
      %v400 = vpack.c.b16 %v374, %v372
      %v401 = vpack.c.b16 %v377, %v375
      %v402 = vpack.c.b16 %v378, %v376
      %v403 = vpack.c.b16 %v381, %v379
      %v404 = vpack.c.b16 %v382, %v380
      %v405 = vpack.c.b16 %v385, %v383
      %v406 = vpack.c.b16 %v386, %v384
      %v428 = vsel %vm247, %v300, 0
      %430 = vmatpush.bf16.msra.mxu0 %v401
      %431 = vmatpush.bf16.msra.mxu0 %v399
      %432 = vmatpush.bf16.msra.mxu0 %v397
      %433 = vmatpush.bf16.msra.mxu0 %v395
      %434 = vmatpush.bf16.msra.mxu0 %v393
      %435 = vmatpush.bf16.msra.mxu0 %v391
      %436 = vmatpush.bf16.msra.mxu0 %v389
      %437 = vmatpush.bf16.msra.mxu0 %v387
      %438 = vmatmul.bf16.gmra.mxu0 %v299
      %v439 = vpop.f32.mrf.mxu0
      %v440 = vadd.f32 %v323, %v439
      %v441 = vpop.f32.mrf.mxu0
      %442 = vdwg.mxu0
      %443 = vmatpush.bf16.msra.mxu0 0
      %444 = vmatpush.bf16.msra.mxu0 0
      %445 = vmatpush.bf16.msra.mxu0 0
      %446 = vmatpush.bf16.msra.mxu0 0
      %447 = vmatpush.bf16.msra.mxu0 0
      %448 = vmatpush.bf16.msra.mxu0 0
      %449 = vmatpush.bf16.msra.mxu0 %v405
      %450 = vmatpush.bf16.msra.mxu0 %v403
      %451 = vmatmul.bf16.gmra.mxu0 %v428
      %v452 = vpop.f32.mrf.mxu0
      %v453 = vadd.f32 %v440, %v452
      %v454 = vpop.f32.mrf.mxu0
      %455 = vdwg.mxu0
      %456 = vmatpush.bf16.msra.mxu0 %v402
      %457 = vmatpush.bf16.msra.mxu0 %v400
      %458 = vmatpush.bf16.msra.mxu0 %v398
      %459 = vmatpush.bf16.msra.mxu0 %v396
      %460 = vmatpush.bf16.msra.mxu0 %v394
      %461 = vmatpush.bf16.msra.mxu0 %v392
      %462 = vmatpush.bf16.msra.mxu0 %v390
      %463 = vmatpush.bf16.msra.mxu0 %v388
      %464 = vmatmul.bf16.gmra.mxu0 %v299
      %v465 = vpop.f32.mrf.mxu0
      %v466 = vadd.f32 %v324, %v465
      %v467 = vpop.f32.mrf.mxu0
      %468 = vdwg.mxu0
      %469 = vmatpush.bf16.msra.mxu0 0
      %470 = vmatpush.bf16.msra.mxu0 0
      %471 = vmatpush.bf16.msra.mxu0 0
      %472 = vmatpush.bf16.msra.mxu0 0
      %473 = vmatpush.bf16.msra.mxu0 0
      %474 = vmatpush.bf16.msra.mxu0 0
      %475 = vmatpush.bf16.msra.mxu0 %v406
      %476 = vmatpush.bf16.msra.mxu0 %v404
      %477 = vmatmul.bf16.gmra.mxu0 %v428
      %v478 = vpop.f32.mrf.mxu0
      %v479 = vadd.f32 %v466, %v478
      %v480 = vpop.f32.mrf.mxu0
      %481 = vdwg.mxu0
      %482 = vst [vmem:[%s189] sm:$0xff] %v453
      %483 = vst.msk [vmem:[%s189 + $0x8] sm:$0xff] %vm247, %v479
      %p484 = scmp.lt.s32.totalorder %s18, 1
      %s485 = scalar_select %p484, %s18, 1
      %p486 = scmp.lt.s32.totalorder %s19, 0
      %s487 = scalar_select %p486, %s19, 0
      %s488 = smul.addr %s487, 2
      %s489 = smul.addr %s485, 2
      %s490 = sadd.s32 %s488, %s489
      %s491 = smul.addr %s490, 8
      %s492 = scalar_lea.vmem %s3, %s491
      // Predicated region
      $region37: #{dbow_input_forward.1} parent=31 // pred_check
        %p493 = pneg %p114
      $region38: #{dbow_input_forward.1} parent=31 // pred_check_branch
        %495 = sbr.rel (%p493) target = $region40
      $region39: #{dbow_input_forward.1} parent=31 // pred_region
        _
      $region40: #{dbow_input_forward.1} parent=31 // pred_fallthru
        _
    $region32: #{dbow_input_forward.1} parent=5 // pred_fallthru
      _
    %p496 = scmp.le.s32.totalorder 2, %s9
    // Predicated region
    $region41: #{dbow_input_forward.1} parent=5 // pred_check
      %p497 = pneg %p496
    $region42: #{dbow_input_forward.1} parent=5 // pred_check_branch
      %499 = sbr.rel (%p497) target = $region44
    $region43: #{dbow_input_forward.1} parent=5 // pred_region
      %s500 = ssub.s32 %s9, 2
      // Predicated region
      $region45: #{dbow_input_forward.1} parent=43 // pred_check
        %p501 = pneg %p120
      $region46: #{dbow_input_forward.1} parent=43 // pred_check_branch
        %503 = sbr.rel (%p501) target = $region48
      $region47: #{dbow_input_forward.1} parent=43 // pred_region
        %p504 = scmp.lt.s32.totalorder %s20, 1
        %s505 = scalar_select %p504, %s20, 1
        %p506 = scmp.lt.s32.totalorder %s21, 0
        %s507 = scalar_select %p506, %s21, 0
        %s508 = smul.addr %s507, 2
        %s509 = smul.addr %s505, 2
        %s510 = sadd.s32 %s508, %s509
        %s511 = smul.addr %s510, 8
        %s512 = scalar_lea.vmem %s3, %s511
      $region48: #{dbow_input_forward.1} parent=43 // pred_fallthru
        _
    $region44: #{dbow_input_forward.1} parent=5 // pred_fallthru
      _
  $region6: #{dbow_input_forward.1} parent=0 // loop_footer
    %s13 = sadd.s32 1, %s9
  $region7: #{dbow_input_forward.1} parent=0 // loop_footer_branch
    %8 = sbr.rel target = $region3
  $region8: #{dbow_input_forward.1} parent=0 // loop_exit
    _

</llo_original>
